<compile_context>
chip_gen: v6e
topology: v6e:2x2x1
jax: 0.10.0
libtpu: 0.0.40
codegen_flags: <defaults>
</compile_context>

<pallas_src>
import jax
import jax.numpy as jnp
from jax.experimental import pallas as pl
from jax.experimental.pallas import tpu as pltpu


def _round_up(x, m):
    return ((x + m - 1) // m) * m


def pen_kernel(z_ref, w1_ref, b1_ref, w2_ref, b2_ref, w3_ref, b3_ref, o_ref):
    """Fused 3-layer MLP on one batch tile.

    Dots run with bf16 operands + f32 accumulation (MXU fast path);
    bias add / ReLU stay in f32. Final store is in o_ref.dtype (bf16).
    """
    z = z_ref[...]                                               # (tb, 2E) bf16

    # Layer 1: cat(z1, z2) @ W1 done as a single K=2E dot.
    h1 = jnp.dot(z, w1_ref[...], preferred_element_type=jnp.float32)
    h1 = jnp.maximum(h1 + b1_ref[...], 0.0)                      # (tb, Hp) f32

    # Layer 2
    h2 = jnp.dot(h1.astype(jnp.bfloat16), w2_ref[...],
                 preferred_element_type=jnp.float32)
    h2 = jnp.maximum(h2 + b2_ref[...], 0.0)                      # (tb, Hp) f32

    # Output layer (lane-dense, padded nbins)
    o = jnp.dot(h2.astype(jnp.bfloat16), w3_ref[...],
                preferred_element_type=jnp.float32)
    o_ref[...] = (o + b3_ref[...]).astype(o_ref.dtype)           # (tb, Np)


def pen_forward(z1, z2, params, *, nbins, tile_b=1024, out_dtype=jnp.bfloat16):
    """Run the fused Pallas MLP over a batch, tiled along the batch axis."""
    w1, b1, w2, b2, w3, b3 = params
    B, E = z1.shape
    Hp = w1.shape[1]
    Np = w3.shape[1]

    # --- Tile selection ------------------------------------------------------
    # Derive the tile from the number of tiles so padding is <= 7 rows.
    # For non-tiny batches require >= 2 tiles so both v7x TensorCores get work
    # (the "parallel" batch axis is what shards across TCs); on v5e/v6e the
    # extra grid step costs ~0.35 us, which is negligible at B >= 16.
    min_tiles = 2 if B >= 16 else 1
    ntiles = max(min_tiles, pl.cdiv(B, tile_b))
    tb = _round_up(pl.cdiv(B, ntiles), 8)
    Bp = tb * ntiles

    # --- Input prep: merge z1/z2, cast to bf16, pad batch --------------------
    zcat = jnp.concatenate([z1, z2], axis=1).astype(jnp.bfloat16)   # (B, 2E)
    if Bp != B:
        zcat = jnp.pad(zcat, ((0, Bp - B), (0, 0)))

    def act_spec(shape):       # tiled along batch
        return pl.BlockSpec(shape, lambda i: (i, 0))

    def resident_spec(shape):  # constant block -> stays in VMEM across the grid
        return pl.BlockSpec(shape, lambda i: (0, 0))

    # --- Advisory cost estimate ----------------------------------------------
    weight_bytes = (w1.size + w2.size + w3.size) * 2 + (b1.size + b2.size + b3.size) * 4
    out_bytes = jnp.dtype(out_dtype).itemsize
    flops = 2 * Bp * (2 * E * Hp + Hp * Hp + Hp * Np)
    bytes_accessed = Bp * (2 * E * 2 + Np * out_bytes) + weight_bytes
    cost = pl.CostEstimate(flops=flops, transcendentals=0,
                           bytes_accessed=bytes_accessed)

    out = pl.pallas_call(
        pen_kernel,
        out_shape=jax.ShapeDtypeStruct((Bp, Np), out_dtype),
        grid=(ntiles,),
        in_specs=[
            act_spec((tb, 2 * E)),        # zcat
            resident_spec((2 * E, Hp)),   # w1
            resident_spec((1, Hp)),       # b1
            resident_spec((Hp, Hp)),      # w2
            resident_spec((1, Hp)),       # b2
            resident_spec((Hp, Np)),      # w3
            resident_spec((1, Np)),       # b3
        ],
        out_specs=act_spec((tb, Np)),
        compiler_params=pltpu.CompilerParams(
            dimension_semantics=("parallel",),   # shards batch tiles on v7x's 2 TCs
            vmem_limit_bytes=32 * 1024 * 1024,   # tiny footprint; safe on v7x 64 MiB
        ),
        cost_estimate=cost,
    )(zcat, w1, b1, w2, b2, w3, b3)

    return out[:B, :nbins]


def pen_reference(z1, z2, params, *, nbins):
    """Pure-JAX reference with the same bf16-operand / f32-accumulate math."""
    w1, b1, w2, b2, w3, b3 = params
    zcat = jnp.concatenate([z1, z2], axis=1).astype(jnp.bfloat16)
    h1 = jnp.dot(zcat, w1, preferred_element_type=jnp.float32)
    h1 = jnp.maximum(h1 + b1, 0.0)
    h2 = jnp.dot(h1.astype(jnp.bfloat16), w2, preferred_element_type=jnp.float32)
    h2 = jnp.maximum(h2 + b2, 0.0)
    o = jnp.dot(h2.astype(jnp.bfloat16), w3, preferred_element_type=jnp.float32)
    return (o + b3)[:, :nbins]


def init_params(key, embedding_size, pen_hidden, nbins):
    """Xavier-normal weights / uniform biases (matching init_weights in spirit),
    pre-transposed to (in, out), zero-padded to lane-dense widths (multiples of
    128), and cast to bf16 for the MXU. Biases stay f32."""
    E = embedding_size
    in1 = 2 * E
    Hp = _round_up(pen_hidden, 128)   # keep at 128 multiples; do NOT pad to 256
    Np = _round_up(nbins, 128)

    k1, k2, k3, k4, k5, k6 = jax.random.split(key, 6)

    def xavier(k, fan_in, fan_out, shape):
        std = jnp.sqrt(2.0 / (fan_in + fan_out))
        return (std * jax.random.normal(k, shape)).astype(jnp.float32)

    # Stored as (in, out) so the kernel does x @ W (== PyTorch x @ W.T).
    w1 = xavier(k1, in1, pen_hidden, (in1, pen_hidden))
    w2 = xavier(k2, pen_hidden, pen_hidden, (pen_hidden, pen_hidden))
    w3 = xavier(k3, pen_hidden, nbins, (pen_hidden, nbins))

    # PyTorch Linear default bias init: uniform(-1/sqrt(fan_in), 1/sqrt(fan_in)).
    b1 = (jax.random.uniform(k4, (1, pen_hidden), minval=-1.0, maxval=1.0)
          / jnp.sqrt(in1)).astype(jnp.float32)
    b2 = (jax.random.uniform(k5, (1, pen_hidden), minval=-1.0, maxval=1.0)
          / jnp.sqrt(pen_hidden)).astype(jnp.float32)
    b3 = (jax.random.uniform(k6, (1, nbins), minval=-1.0, maxval=1.0)
          / jnp.sqrt(pen_hidden)).astype(jnp.float32)

    def pad2(a, rows, cols):
        out = jnp.zeros((rows, cols), jnp.float32)
        return out.at[:a.shape[0], :a.shape[1]].set(a)

    w1p = pad2(w1, in1, Hp).astype(jnp.bfloat16)
    w2p = pad2(w2, Hp, Hp).astype(jnp.bfloat16)
    w3p = pad2(w3, Hp, Np).astype(jnp.bfloat16)
    b1p = pad2(b1, 1, Hp)
    b2p = pad2(b2, 1, Hp)
    b3p = pad2(b3, 1, Np)

    return (w1p, b1p, w2p, b2p, w3p, b3p)


if __name__ == "__main__":
    # Small, module-consistent shapes: embedding_size=4, pen_hidden=32, nbins=8
    batch = 2
    embedding_size = 4
    pen_hidden = 32
    nbins = 8

    key = jax.random.PRNGKey(0)
    kz1, kz2, kp = jax.random.split(key, 3)
    z1 = jax.random.normal(kz1, (batch, embedding_size), dtype=jnp.float32)
    z2 = jax.random.normal(kz2, (batch, embedding_size), dtype=jnp.float32)
    params = init_params(kp, embedding_size, pen_hidden, nbins)

    out = pen_forward(z1, z2, params, nbins=nbins)
    jax.block_until_ready(out)

    ref = pen_reference(z1, z2, params, nbins=nbins)
    assert out.shape == (batch, nbins)
    # Kernel output is bf16 (halves the dominant HBM writeback); compare with
    # a bf16-appropriate tolerance against the f32-stored reference.
    assert jnp.allclose(out.astype(jnp.float32), ref, atol=2e-2, rtol=2e-2)

    # TODO(synk): predict() (softmax over mids) is host-side glue in the
    # original module and is intentionally not part of the fused kernel.
    print("KERNEL_OK")
</pallas_src>

<mosaic_0001>
module attributes {stable_mosaic.version = 11 : i64} {
  func.func @pen_kernel(%arg0: i32, %arg1: memref<8x8xbf16, #tpu.memory_space<vmem>>, %arg2: memref<8x128xbf16, #tpu.memory_space<vmem>>, %arg3: memref<1x128xf32, #tpu.memory_space<vmem>>, %arg4: memref<128x128xbf16, #tpu.memory_space<vmem>>, %arg5: memref<1x128xf32, #tpu.memory_space<vmem>>, %arg6: memref<128x128xbf16, #tpu.memory_space<vmem>>, %arg7: memref<1x128xf32, #tpu.memory_space<vmem>>, %arg8: memref<8x128xbf16, #tpu.memory_space<vmem>>) attributes {dimension_semantics = [#tpu.dimension_semantics<parallel>], iteration_bounds = array<i64: 1>, scalar_prefetch = 0 : i64, scratch_operands = 0 : i64, tpu.core_type = #tpu.core_type<tc>, window_params = [{transform_indices = @transform_0, window_bounds = array<i64: 8, 8>}, {pipeline_mode = #tpu.pipeline_mode<synchronous>, transform_indices = @transform_1, window_bounds = array<i64: 8, 128>}, {pipeline_mode = #tpu.pipeline_mode<synchronous>, transform_indices = @transform_2, window_bounds = array<i64: 1, 128>}, {pipeline_mode = #tpu.pipeline_mode<synchronous>, transform_indices = @transform_3, window_bounds = array<i64: 128, 128>}, {pipeline_mode = #tpu.pipeline_mode<synchronous>, transform_indices = @transform_4, window_bounds = array<i64: 1, 128>}, {pipeline_mode = #tpu.pipeline_mode<synchronous>, transform_indices = @transform_5, window_bounds = array<i64: 128, 128>}, {pipeline_mode = #tpu.pipeline_mode<synchronous>, transform_indices = @transform_6, window_bounds = array<i64: 1, 128>}, {transform_indices = @transform_7, window_bounds = array<i64: 8, 128>}]} {
    %c0 = arith.constant 0 : index
    %c0_0 = arith.constant 0 : index
    %0 = vector.load %arg1[%c0, %c0_0] : memref<8x8xbf16, #tpu.memory_space<vmem>>, vector<8x8xbf16>
    %c0_1 = arith.constant 0 : index
    %c0_2 = arith.constant 0 : index
    %1 = vector.load %arg2[%c0_1, %c0_2] : memref<8x128xbf16, #tpu.memory_space<vmem>>, vector<8x128xbf16>
    %cst = arith.constant dense<0.000000e+00> : vector<8x128xf32>
    %2 = tpu.matmul %0, %1, %cst {dimension_numbers = #tpu.dot_dimension_numbers<[1], [0], [0], [1], [0, 0, 1, 1], [], []>} : vector<8x8xbf16>, vector<8x128xbf16>, vector<8x128xf32> -> vector<8x128xf32>
    %c0_3 = arith.constant 0 : index
    %c0_4 = arith.constant 0 : index
    %3 = vector.load %arg3[%c0_3, %c0_4] : memref<1x128xf32, #tpu.memory_space<vmem>>, vector<1x128xf32>
    %4 = vector.broadcast %3 : vector<1x128xf32> to vector<8x128xf32>
    %5 = arith.addf %2, %4 : vector<8x128xf32>
    %cst_5 = arith.constant 0.000000e+00 : f32
    %6 = vector.broadcast %cst_5 : f32 to vector<8x128xf32>
    %7 = arith.maximumf %5, %6 : vector<8x128xf32>
    %8 = arith.truncf %7 : vector<8x128xf32> to vector<8x128xbf16>
    %c0_6 = arith.constant 0 : index
    %c0_7 = arith.constant 0 : index
    %9 = vector.load %arg4[%c0_6, %c0_7] : memref<128x128xbf16, #tpu.memory_space<vmem>>, vector<128x128xbf16>
    %cst_8 = arith.constant dense<0.000000e+00> : vector<8x128xf32>
    %10 = tpu.matmul %8, %9, %cst_8 {dimension_numbers = #tpu.dot_dimension_numbers<[1], [0], [0], [1], [0, 0, 1, 1], [], []>} : vector<8x128xbf16>, vector<128x128xbf16>, vector<8x128xf32> -> vector<8x128xf32>
    %c0_9 = arith.constant 0 : index
    %c0_10 = arith.constant 0 : index
    %11 = vector.load %arg5[%c0_9, %c0_10] : memref<1x128xf32, #tpu.memory_space<vmem>>, vector<1x128xf32>
    %12 = vector.broadcast %11 : vector<1x128xf32> to vector<8x128xf32>
    %13 = arith.addf %10, %12 : vector<8x128xf32>
    %cst_11 = arith.constant 0.000000e+00 : f32
    %14 = vector.broadcast %cst_11 : f32 to vector<8x128xf32>
    %15 = arith.maximumf %13, %14 : vector<8x128xf32>
    %16 = arith.truncf %15 : vector<8x128xf32> to vector<8x128xbf16>
    %c0_12 = arith.constant 0 : index
    %c0_13 = arith.constant 0 : index
    %17 = vector.load %arg6[%c0_12, %c0_13] : memref<128x128xbf16, #tpu.memory_space<vmem>>, vector<128x128xbf16>
    %cst_14 = arith.constant dense<0.000000e+00> : vector<8x128xf32>
    %18 = tpu.matmul %16, %17, %cst_14 {dimension_numbers = #tpu.dot_dimension_numbers<[1], [0], [0], [1], [0, 0, 1, 1], [], []>} : vector<8x128xbf16>, vector<128x128xbf16>, vector<8x128xf32> -> vector<8x128xf32>
    %c0_15 = arith.constant 0 : index
    %c0_16 = arith.constant 0 : index
    %19 = vector.load %arg7[%c0_15, %c0_16] : memref<1x128xf32, #tpu.memory_space<vmem>>, vector<1x128xf32>
    %20 = vector.broadcast %19 : vector<1x128xf32> to vector<8x128xf32>
    %21 = arith.addf %18, %20 : vector<8x128xf32>
    %22 = arith.truncf %21 : vector<8x128xf32> to vector<8x128xbf16>
    %c0_17 = arith.constant 0 : index
    %c0_18 = arith.constant 0 : index
    %23 = vector.load %arg8[%c0_17, %c0_18] : memref<8x128xbf16, #tpu.memory_space<vmem>>, vector<8x128xbf16>
    tpu.vector_store %arg8[%c0_17, %c0_18], %22 {strides = array<i32>} : memref<8x128xbf16, #tpu.memory_space<vmem>>, vector<8x128xbf16>,
    return
  }
  func.func @transform_0(%arg0: i32) -> (i32, i32) {
    %c0_i32 = arith.constant 0 : i32
    %c0_i32_0 = arith.constant 0 : i32
    return %arg0, %c0_i32 : i32, i32
  }
  func.func @transform_1(%arg0: i32) -> (i32, i32) {
    %c0_i32 = arith.constant 0 : i32
    %c0_i32_0 = arith.constant 0 : i32
    %c0_i32_1 = arith.constant 0 : i32
    return %c0_i32, %c0_i32_0 : i32, i32
  }
  func.func @transform_2(%arg0: i32) -> (i32, i32) {
    %c0_i32 = arith.constant 0 : i32
    %c0_i32_0 = arith.constant 0 : i32
    %c0_i32_1 = arith.constant 0 : i32
    return %c0_i32, %c0_i32_0 : i32, i32
  }
  func.func @transform_3(%arg0: i32) -> (i32, i32) {
    %c0_i32 = arith.constant 0 : i32
    %c0_i32_0 = arith.constant 0 : i32
    %c0_i32_1 = arith.constant 0 : i32
    return %c0_i32, %c0_i32_0 : i32, i32
  }
  func.func @transform_4(%arg0: i32) -> (i32, i32) {
    %c0_i32 = arith.constant 0 : i32
    %c0_i32_0 = arith.constant 0 : i32
    %c0_i32_1 = arith.constant 0 : i32
    return %c0_i32, %c0_i32_0 : i32, i32
  }
  func.func @transform_5(%arg0: i32) -> (i32, i32) {
    %c0_i32 = arith.constant 0 : i32
    %c0_i32_0 = arith.constant 0 : i32
    %c0_i32_1 = arith.constant 0 : i32
    return %c0_i32, %c0_i32_0 : i32, i32
  }
  func.func @transform_6(%arg0: i32) -> (i32, i32) {
    %c0_i32 = arith.constant 0 : i32
    %c0_i32_0 = arith.constant 0 : i32
    %c0_i32_1 = arith.constant 0 : i32
    return %c0_i32, %c0_i32_0 : i32, i32
  }
  func.func @transform_7(%arg0: i32) -> (i32, i32) {
    %c0_i32 = arith.constant 0 : i32
    %c0_i32_0 = arith.constant 0 : i32
    return %arg0, %c0_i32 : i32, i32
  }
}

</mosaic_0001>

<llo_original>
// kernel: tpu_custom_call.1
$region0: #{tpu_custom_call.1}
  #allocation0 [shape = 'u32[]', space=smem, size = 0x4, offset = 0x4, fixed_abs, tag = 'smem constant byte address 0x4 - core index']
  #allocation1 [shape = 'u32[144,128]{1,0:T(1,128)}', space=vmem, size = 0x12000, scoped, tag = 'internal scratch']
  %s0 = inlined_call_operand.hbm [shape: bf16[8,8], index: 0, kind: input, shape index: {}]
  %s1 = inlined_call_operand.hbm [shape: bf16[8,128], index: 1, kind: input, shape index: {}]
  %s2 = inlined_call_operand.vmem [shape: f32[1,128], index: 2, kind: input, shape index: {}]
  %s3 = inlined_call_operand.hbm [shape: bf16[128,128], index: 3, kind: input, shape index: {}]
  %s4 = inlined_call_operand.vmem [shape: f32[1,128], index: 4, kind: input, shape index: {}]
  %s5 = inlined_call_operand.hbm [shape: bf16[128,128], index: 5, kind: input, shape index: {}]
  %s6 = inlined_call_operand.vmem [shape: f32[1,128], index: 6, kind: input, shape index: {}]
  %s7 = inlined_call_operand.hbm [shape: bf16[8,128], index: 7, kind: output, shape index: {}]
  %s8 = sld [smem:[#allocation0]]
  $region54: #{tpu_custom_call.1} parent=0
    _
  %s10 = ssub.s32 1, %s8
  %s11 = scalar_select 0, %s10, %s8
  $region1: #{tpu_custom_call.1} parent=0
    #allocation2 [shape = 'u8[2048]{0}', space=vmem, size = 0x800, scoped, tag = 'input window, operand 0, single buffered']
    #allocation3 [shape = 's32[1]{0}', space=sflag, size = 0x4, scoped, tag = 'scoped memory for tpu_custom_call.1']
    #allocation4 [shape = 's32[1]{0}', space=sflag, size = 0x4, scoped, tag = 'scoped memory for tpu_custom_call.1']
    #allocation5 [shape = 'u8[2048]{0}', space=vmem, size = 0x800, scoped, tag = 'input window, operand 1, single buffered']
    #allocation6 [shape = 's32[1]{0}', space=sflag, size = 0x4, scoped, tag = 'scoped memory for tpu_custom_call.1']
    #allocation7 [shape = 'u8[32768]{0}', space=vmem, size = 0x8000, scoped, tag = 'input window, operand 3, single buffered']
    #allocation8 [shape = 'u8[32768]{0}', space=vmem, size = 0x8000, scoped, tag = 'input window, operand 5, single buffered']
    #allocation9 [shape = 's32[1]{0}', space=sflag, size = 0x4, scoped, tag = 'scoped memory for tpu_custom_call.1']
    #allocation10 [shape = 'u8[2048]{0}', space=vmem, size = 0x800, scoped, tag = 'output window, operand 0, single buffered']
    %12 = vsyncpa [#allocation3], 0
    %13 = vsyncpa [#allocation6], 0
    %14 = vsyncpa [#allocation9], 0
    %15 = vsyncpa [#allocation4], 0
    // Predicated region
    $region2: #{tpu_custom_call.1} parent=1 // pred_check
      _
    $region3: #{tpu_custom_call.1} parent=1 // pred_check_branch
      %17 = sbr.rel (0) target = $region5
    $region4: #{tpu_custom_call.1} parent=1 // pred_region
      %s19 = ssub.s32 64, 64
      %20 = vsyncadd [#allocation3], %s19
      %s22 = sshll.u32 [#allocation2], 4
      %s23 = int_to_ptr.vmem [resolvable:$true] %s22
      %25 = dma.hbm_to_vmem [thread:$0]  %s0, 64, %s23, [#allocation3]
    $region5: #{tpu_custom_call.1} parent=1 // pred_fallthru
      _
    // Predicated region
    $region6: #{tpu_custom_call.1} parent=1 // pred_check
      _
    $region7: #{tpu_custom_call.1} parent=1 // pred_check_branch
      %27 = sbr.rel (0) target = $region9
    $region8: #{tpu_custom_call.1} parent=1 // pred_region
      %s29 = ssub.s32 64, 64
      %30 = vsyncadd [#allocation6], %s29
      %s32 = sshll.u32 [#allocation5], 4
      %s33 = int_to_ptr.vmem [resolvable:$true] %s32
      %35 = dma.hbm_to_vmem [thread:$0]  %s1, 64, %s33, [#allocation6]
    $region9: #{tpu_custom_call.1} parent=1 // pred_fallthru
      _
    // Predicated region
    $region10: #{tpu_custom_call.1} parent=1 // pred_check
      _
    $region11: #{tpu_custom_call.1} parent=1 // pred_check_branch
      %37 = sbr.rel (0) target = $region13
    $region12: #{tpu_custom_call.1} parent=1 // pred_region
      _
    $region13: #{tpu_custom_call.1} parent=1 // pred_fallthru
      _
    // Predicated region
    $region14: #{tpu_custom_call.1} parent=1 // pred_check
      _
    $region15: #{tpu_custom_call.1} parent=1 // pred_check_branch
      %39 = sbr.rel (0) target = $region17
    $region16: #{tpu_custom_call.1} parent=1 // pred_region
      %s41 = ssub.s32 1024, 1024
      %42 = vsyncadd [#allocation6], %s41
      %s43 = sshll.u32 [#allocation7], 4
      %s44 = int_to_ptr.vmem [resolvable:$true] %s43
      %49 = dma.hbm_to_vmem [thread:$0]  %s3, 1024, %s44, [#allocation6], 64, 64, 4
    $region17: #{tpu_custom_call.1} parent=1 // pred_fallthru
      _
    // Predicated region
    $region18: #{tpu_custom_call.1} parent=1 // pred_check
      _
    $region19: #{tpu_custom_call.1} parent=1 // pred_check_branch
      %51 = sbr.rel (0) target = $region21
    $region20: #{tpu_custom_call.1} parent=1 // pred_region
      _
    $region21: #{tpu_custom_call.1} parent=1 // pred_fallthru
      _
    // Predicated region
    $region22: #{tpu_custom_call.1} parent=1 // pred_check
      _
    $region23: #{tpu_custom_call.1} parent=1 // pred_check_branch
      %53 = sbr.rel (0) target = $region25
    $region24: #{tpu_custom_call.1} parent=1 // pred_region
      %s55 = ssub.s32 1024, 1024
      %56 = vsyncadd [#allocation9], %s55
      %s57 = sshll.u32 [#allocation8], 4
      %s58 = int_to_ptr.vmem [resolvable:$true] %s57
      %63 = dma.hbm_to_vmem [thread:$0]  %s5, 1024, %s58, [#allocation9], 64, 64, 4
    $region25: #{tpu_custom_call.1} parent=1 // pred_fallthru
      _
    // Predicated region
    $region26: #{tpu_custom_call.1} parent=1 // pred_check
      _
    $region27: #{tpu_custom_call.1} parent=1 // pred_check_branch
      %65 = sbr.rel (0) target = $region29
    $region28: #{tpu_custom_call.1} parent=1 // pred_region
      _
    $region29: #{tpu_custom_call.1} parent=1 // pred_fallthru
      _
    // Predicated region
    $region30: #{tpu_custom_call.1} parent=1 // pred_check
      _
    $region31: #{tpu_custom_call.1} parent=1 // pred_check_branch
      %67 = sbr.rel (0) target = $region33
    $region32: #{tpu_custom_call.1} parent=1 // pred_region
      %68 = dma.done [#allocation3], 64
    $region33: #{tpu_custom_call.1} parent=1 // pred_fallthru
      _
    // Predicated region
    $region34: #{tpu_custom_call.1} parent=1 // pred_check
      _
    $region35: #{tpu_custom_call.1} parent=1 // pred_check_branch
      %70 = sbr.rel (0) target = $region37
    $region36: #{tpu_custom_call.1} parent=1 // pred_region
      %71 = dma.done [#allocation6], 64
    $region37: #{tpu_custom_call.1} parent=1 // pred_fallthru
      _
    // Predicated region
    $region38: #{tpu_custom_call.1} parent=1 // pred_check
      _
    $region39: #{tpu_custom_call.1} parent=1 // pred_check_branch
      %73 = sbr.rel (0) target = $region41
    $region40: #{tpu_custom_call.1} parent=1 // pred_region
      %74 = dma.done [#allocation6], 1024
    $region41: #{tpu_custom_call.1} parent=1 // pred_fallthru
      _
    // Predicated region
    $region42: #{tpu_custom_call.1} parent=1 // pred_check
      _
    $region43: #{tpu_custom_call.1} parent=1 // pred_check_branch
      %76 = sbr.rel (0) target = $region45
    $region44: #{tpu_custom_call.1} parent=1 // pred_region
      %77 = dma.done [#allocation9], 1024
    $region45: #{tpu_custom_call.1} parent=1 // pred_fallthru
      _
    %v79 = vld [vmem:[#allocation2] sm:$0xf]
    %v80 = vld [vmem:[#allocation5] sm:$0xf]
    %v81 = vld [vmem:[%s2] sm:$0x1]
    %v83 = vlaneseq
    %v84 = vshrl.u32 %v83, 7
    %v85 = vsub.s32 0, %v84
    %v86 = vrot.slane %v81, %v85
    %vm88 = vcmask 64512
    %v90 = vsel %vm88, %v79, 0
    %vm92 = vcmask 1043456
    %v94 = vsel %vm92, %v80, 0
    %96 = vmatprep.subr.bf16.mxu0 0
    %97 = vmatpush1.bf16.msra.mxu0 0
    %98 = vmatprep.subr.bf16.mxu0 0
    %99 = vmatpush1.bf16.msra.mxu0 0
    %100 = vmatprep.subr.bf16.mxu0 0
    %101 = vmatpush1.bf16.msra.mxu0 0
    %102 = vmatprep.subr.bf16.mxu0 0
    %103 = vmatpush1.bf16.msra.mxu0 0
    %104 = vmatprep.subr.bf16.mxu0 0
    %105 = vmatpush1.bf16.msra.mxu0 0
    %106 = vmatprep.subr.bf16.mxu0 0
    %107 = vmatpush1.bf16.msra.mxu0 0
    %108 = vmatprep.subr.bf16.mxu0 0
    %109 = vmatpush1.bf16.msra.mxu0 0
    %110 = vmatprep.subr.bf16.mxu0 0
    %111 = vmatpush1.bf16.msra.mxu0 %v94
    %112 = vmatprep.subr.bf16.mxu0 0
    %113 = vmatpush2.bf16.msra.mxu0 0
    %114 = vmatprep.subr.bf16.mxu0 0
    %115 = vmatpush2.bf16.msra.mxu0 0
    %116 = vmatprep.subr.bf16.mxu0 0
    %117 = vmatpush2.bf16.msra.mxu0 0
    %118 = vmatprep.subr.bf16.mxu0 0
    %119 = vmatpush2.bf16.msra.mxu0 0
    %120 = vmatprep.subr.bf16.mxu0 0
    %121 = vmatpush2.bf16.msra.mxu0 0
    %122 = vmatprep.subr.bf16.mxu0 0
    %123 = vmatpush2.bf16.msra.mxu0 0
    %124 = vmatprep.subr.bf16.mxu0 0
    %125 = vmatpush2.bf16.msra.mxu0 0
    %126 = vmatprep.subr.bf16.mxu0 0
    %127 = vmatpush2.bf16.msra.mxu0 0
    %128 = vmatprep.mubr.bf16.mxu0 0
    %129 = vmatmul.mubr.bf16.gmra.mxu0 %v90
    %v130 = vpop.f32.mrf.mxu0
    %v131 = vadd.f32 %v86, %v130
    %v132 = vpop.f32.mrf.mxu0
    %v133 = vpop.f32.mrf.mxu0
    %v134 = vpop.f32.mrf.mxu0
    %135 = vdwg.mxu0
    %v136 = vmax.f32 %v131, 0.0
    %v137 = vpack.c.bf16 %v136, %v136
    %v138 = vld [vmem:[#allocation7] sm:$0xf]
    %v139 = vld [vmem:[#allocation7 + $0x4] sm:$0xf]
    %v140 = vld [vmem:[#allocation7 + $0x8] sm:$0xf]
    %v141 = vld [vmem:[#allocation7 + $0xc] sm:$0xf]
    %v142 = vld [vmem:[#allocation7 + $0x10] sm:$0xf]
    %v143 = vld [vmem:[#allocation7 + $0x14] sm:$0xf]
    %v144 = vld [vmem:[#allocation7 + $0x18] sm:$0xf]
    %v145 = vld [vmem:[#allocation7 + $0x1c] sm:$0xf]
    %v146 = vld [vmem:[#allocation7 + $0x20] sm:$0xf]
    %v147 = vld [vmem:[#allocation7 + $0x24] sm:$0xf]
    %v148 = vld [vmem:[#allocation7 + $0x28] sm:$0xf]
    %v149 = vld [vmem:[#allocation7 + $0x2c] sm:$0xf]
    %v150 = vld [vmem:[#allocation7 + $0x30] sm:$0xf]
    %v151 = vld [vmem:[#allocation7 + $0x34] sm:$0xf]
    %v152 = vld [vmem:[#allocation7 + $0x38] sm:$0xf]
    %v153 = vld [vmem:[#allocation7 + $0x3c] sm:$0xf]
    %v154 = vld [vmem:[%s4] sm:$0x1]
    %v156 = vlaneseq
    %v157 = vshrl.u32 %v156, 7
    %v158 = vsub.s32 0, %v157
    %v159 = vrot.slane %v154, %v158
    %v177 = vunpack.c.l.b16 %v138
    %v178 = vunpack.c.l.b16 %v139
    %v179 = vunpack.c.l.b16 %v140
    %v180 = vunpack.c.l.b16 %v141
    %v181 = vunpack.c.l.b16 %v142
    %v182 = vunpack.c.l.b16 %v143
    %v183 = vunpack.c.l.b16 %v144
    %v184 = vunpack.c.l.b16 %v145
    %v185 = vunpack.c.l.b16 %v146
    %v186 = vunpack.c.l.b16 %v147
    %v187 = vunpack.c.l.b16 %v148
    %v188 = vunpack.c.l.b16 %v149
    %v189 = vunpack.c.l.b16 %v150
    %v190 = vunpack.c.l.b16 %v151
    %v191 = vunpack.c.l.b16 %v152
    %v192 = vunpack.c.l.b16 %v153
    %v193 = vpack.c.b16 %v178, %v177
    %v194 = vpack.c.b16 %v180, %v179
    %v195 = vpack.c.b16 %v182, %v181
    %v196 = vpack.c.b16 %v184, %v183
    %v197 = vpack.c.b16 %v186, %v185
    %v198 = vpack.c.b16 %v188, %v187
    %v199 = vpack.c.b16 %v190, %v189
    %v200 = vpack.c.b16 %v192, %v191
    %209 = vmatprep.subr.bf16.mxu0 0
    %210 = vmatpush1.bf16.msra.mxu0 %v200
    %211 = vmatprep.subr.bf16.mxu0 0
    %212 = vmatpush1.bf16.msra.mxu0 %v199
    %213 = vmatprep.subr.bf16.mxu0 0
    %214 = vmatpush1.bf16.msra.mxu0 %v198
    %215 = vmatprep.subr.bf16.mxu0 0
    %216 = vmatpush1.bf16.msra.mxu0 %v197
    %217 = vmatprep.subr.bf16.mxu0 0
    %218 = vmatpush1.bf16.msra.mxu0 %v196
    %219 = vmatprep.subr.bf16.mxu0 0
    %220 = vmatpush1.bf16.msra.mxu0 %v195
    %221 = vmatprep.subr.bf16.mxu0 0
    %222 = vmatpush1.bf16.msra.mxu0 %v194
    %223 = vmatprep.subr.bf16.mxu0 0
    %224 = vmatpush1.bf16.msra.mxu0 %v193
    %225 = vmatprep.subr.bf16.mxu0 0
    %226 = vmatpush2.bf16.msra.mxu0 0
    %227 = vmatprep.subr.bf16.mxu0 0
    %228 = vmatpush2.bf16.msra.mxu0 0
    %229 = vmatprep.subr.bf16.mxu0 0
    %230 = vmatpush2.bf16.msra.mxu0 0
    %231 = vmatprep.subr.bf16.mxu0 0
    %232 = vmatpush2.bf16.msra.mxu0 0
    %233 = vmatprep.subr.bf16.mxu0 0
    %234 = vmatpush2.bf16.msra.mxu0 0
    %235 = vmatprep.subr.bf16.mxu0 0
    %236 = vmatpush2.bf16.msra.mxu0 0
    %237 = vmatprep.subr.bf16.mxu0 0
    %238 = vmatpush2.bf16.msra.mxu0 0
    %239 = vmatprep.subr.bf16.mxu0 0
    %240 = vmatpush2.bf16.msra.mxu0 0
    %241 = vmatprep.mubr.bf16.mxu0 0
    %242 = vmatmul.mubr.bf16.gmra.mxu0 %v137
    %v243 = vpop.f32.mrf.mxu0
    %v244 = vadd.f32 %v159, %v243
    %v245 = vpop.f32.mrf.mxu0
    %v246 = vpop.f32.mrf.mxu0
    %v247 = vpop.f32.mrf.mxu0
    %248 = vdwg.mxu0
    %v249 = vmax.f32 %v244, 0.0
    %v250 = vpack.c.bf16 %v249, %v249
    %v251 = vld [vmem:[#allocation8] sm:$0xf]
    %v252 = vld [vmem:[#allocation8 + $0x4] sm:$0xf]
    %v253 = vld [vmem:[#allocation8 + $0x8] sm:$0xf]
    %v254 = vld [vmem:[#allocation8 + $0xc] sm:$0xf]
    %v255 = vld [vmem:[#allocation8 + $0x10] sm:$0xf]
    %v256 = vld [vmem:[#allocation8 + $0x14] sm:$0xf]
    %v257 = vld [vmem:[#allocation8 + $0x18] sm:$0xf]
    %v258 = vld [vmem:[#allocation8 + $0x1c] sm:$0xf]
    %v259 = vld [vmem:[#allocation8 + $0x20] sm:$0xf]
    %v260 = vld [vmem:[#allocation8 + $0x24] sm:$0xf]
    %v261 = vld [vmem:[#allocation8 + $0x28] sm:$0xf]
    %v262 = vld [vmem:[#allocation8 + $0x2c] sm:$0xf]
    %v263 = vld [vmem:[#allocation8 + $0x30] sm:$0xf]
    %v264 = vld [vmem:[#allocation8 + $0x34] sm:$0xf]
    %v265 = vld [vmem:[#allocation8 + $0x38] sm:$0xf]
    %v266 = vld [vmem:[#allocation8 + $0x3c] sm:$0xf]
    %v267 = vld [vmem:[%s6] sm:$0x1]
    %v269 = vlaneseq
    %v270 = vshrl.u32 %v269, 7
    %v271 = vsub.s32 0, %v270
    %v272 = vrot.slane %v267, %v271
    %v290 = vunpack.c.l.b16 %v251
    %v291 = vunpack.c.l.b16 %v252
    %v292 = vunpack.c.l.b16 %v253
    %v293 = vunpack.c.l.b16 %v254
    %v294 = vunpack.c.l.b16 %v255
    %v295 = vunpack.c.l.b16 %v256
    %v296 = vunpack.c.l.b16 %v257
    %v297 = vunpack.c.l.b16 %v258
    %v298 = vunpack.c.l.b16 %v259
    %v299 = vunpack.c.l.b16 %v260
    %v300 = vunpack.c.l.b16 %v261
    %v301 = vunpack.c.l.b16 %v262
    %v302 = vunpack.c.l.b16 %v263
    %v303 = vunpack.c.l.b16 %v264
    %v304 = vunpack.c.l.b16 %v265
    %v305 = vunpack.c.l.b16 %v266
    %v306 = vpack.c.b16 %v291, %v290
    %v307 = vpack.c.b16 %v293, %v292
    %v308 = vpack.c.b16 %v295, %v294
    %v309 = vpack.c.b16 %v297, %v296
    %v310 = vpack.c.b16 %v299, %v298
    %v311 = vpack.c.b16 %v301, %v300
    %v312 = vpack.c.b16 %v303, %v302
    %v313 = vpack.c.b16 %v305, %v304
    %322 = vmatprep.subr.bf16.mxu0 0
    %323 = vmatpush1.bf16.msra.mxu0 %v313
    %324 = vmatprep.subr.bf16.mxu0 0
    %325 = vmatpush1.bf16.msra.mxu0 %v312
    %326 = vmatprep.subr.bf16.mxu0 0
    %327 = vmatpush1.bf16.msra.mxu0 %v311
    %328 = vmatprep.subr.bf16.mxu0 0
    %329 = vmatpush1.bf16.msra.mxu0 %v310
    %330 = vmatprep.subr.bf16.mxu0 0
    %331 = vmatpush1.bf16.msra.mxu0 %v309
    %332 = vmatprep.subr.bf16.mxu0 0
    %333 = vmatpush1.bf16.msra.mxu0 %v308
    %334 = vmatprep.subr.bf16.mxu0 0
    %335 = vmatpush1.bf16.msra.mxu0 %v307
    %336 = vmatprep.subr.bf16.mxu0 0
    %337 = vmatpush1.bf16.msra.mxu0 %v306
    %338 = vmatprep.subr.bf16.mxu0 0
    %339 = vmatpush2.bf16.msra.mxu0 0
    %340 = vmatprep.subr.bf16.mxu0 0
    %341 = vmatpush2.bf16.msra.mxu0 0
    %342 = vmatprep.subr.bf16.mxu0 0
    %343 = vmatpush2.bf16.msra.mxu0 0
    %344 = vmatprep.subr.bf16.mxu0 0
    %345 = vmatpush2.bf16.msra.mxu0 0
    %346 = vmatprep.subr.bf16.mxu0 0
    %347 = vmatpush2.bf16.msra.mxu0 0
    %348 = vmatprep.subr.bf16.mxu0 0
    %349 = vmatpush2.bf16.msra.mxu0 0
    %350 = vmatprep.subr.bf16.mxu0 0
    %351 = vmatpush2.bf16.msra.mxu0 0
    %352 = vmatprep.subr.bf16.mxu0 0
    %353 = vmatpush2.bf16.msra.mxu0 0
    %354 = vmatprep.mubr.bf16.mxu0 0
    %355 = vmatmul.mubr.bf16.gmra.mxu0 %v250
    %v356 = vpop.f32.mrf.mxu0
    %v357 = vadd.f32 %v272, %v356
    %v358 = vpop.f32.mrf.mxu0
    %v359 = vpop.f32.mrf.mxu0
    %v360 = vpop.f32.mrf.mxu0
    %361 = vdwg.mxu0
    %v362 = vpack.c.bf16 %v357, %v357
    %363 = vst [vmem:[#allocation10] sm:$0xf] %v362
    // Predicated region
    $region46: #{tpu_custom_call.1} parent=1 // pred_check
      _
    $region47: #{tpu_custom_call.1} parent=1 // pred_check_branch
      %365 = sbr.rel (0) target = $region49
    $region48: #{tpu_custom_call.1} parent=1 // pred_region
      %s367 = ssub.s32 64, 64
      %368 = vsyncadd [#allocation4], %s367
      %s370 = sshll.u32 [#allocation10], 4
      %s371 = int_to_ptr.vmem [resolvable:$true] %s370
      %373 = dma.vmem_to_hbm [thread:$0]  %s371, 64, %s7, [#allocation4]
    $region49: #{tpu_custom_call.1} parent=1 // pred_fallthru
      _
    // Predicated region
    $region50: #{tpu_custom_call.1} parent=1 // pred_check
      _
    $region51: #{tpu_custom_call.1} parent=1 // pred_check_branch
      %375 = sbr.rel (0) target = $region53
    $region52: #{tpu_custom_call.1} parent=1 // pred_region
      %376 = dma.done [#allocation4], 64
    $region53: #{tpu_custom_call.1} parent=1 // pred_fallthru
      _
    %377 = vsyncpa [#allocation3], 1
    %378 = vsyncpa [#allocation6], 1
    %379 = vsyncpa [#allocation9], 1
    %380 = vsyncpa [#allocation4], 1

</llo_original>
